<compile_context>
chip_gen: v5e
topology: v5e:2x2
jax: 0.10.0
libtpu: 0.0.40
codegen_flags: <defaults>
</compile_context>

<pallas_src>
import jax
import jax.numpy as jnp
from jax import lax
from jax.experimental import pallas as pl
from jax.experimental.pallas import tpu as pltpu

NUM_CLASSES = 2


def _round_up(n, m):
    return ((n + m - 1) // m) * m


def _mlp_kernel(x_ref, w1_ref, b1_ref, w2_ref, b2_ref,
                w3_ref, b3_ref, w4_ref, b4_ref, o_ref):
    # x tile: [TB, F] f32; cast to bf16 here (free under the DMA, VPU has slack).
    xb = x_ref[...].astype(jnp.bfloat16)

    # Layer 1 (transposed): h1 = relu(W1 @ x^T + b1)  -> (10, TB)
    # dot_general contracts the last dim of both operands (A @ B^T on the MXU).
    h = lax.dot_general(
        w1_ref[...], xb,
        dimension_numbers=(((1,), (1,)), ((), ())),
        preferred_element_type=jnp.float32) + b1_ref[...]
    h = jnp.maximum(h, 0.0)

    # Layer 2: (10,10) @ (10,TB)
    h = jnp.dot(w2_ref[...], h.astype(jnp.bfloat16),
                preferred_element_type=jnp.float32) + b2_ref[...]
    h = jnp.maximum(h, 0.0)

    # Layer 3: (10,10) @ (10,TB)
    h = jnp.dot(w3_ref[...], h.astype(jnp.bfloat16),
                preferred_element_type=jnp.float32) + b3_ref[...]
    h = jnp.maximum(h, 0.0)

    # Output layer: logits (2, TB), f32.
    logits = jnp.dot(w4_ref[...], h.astype(jnp.bfloat16),
                     preferred_element_type=jnp.float32) + b4_ref[...]

    # Analytic 2-class log_softmax:
    #   d = l1 - l0 ; log p0 = -softplus(d) ; log p1 = d - softplus(d)
    d = logits[1:2, :] - logits[0:1, :]                       # (1, TB)
    sp = jnp.maximum(d, 0.0) + jnp.log(1.0 + jnp.exp(-jnp.abs(d)))  # stable softplus
    o_ref[0:1, :] = (-sp).astype(o_ref.dtype)
    o_ref[1:2, :] = (d - sp).astype(o_ref.dtype)


def _pick_tiles(batch, feat, tile_b, vmem_budget_bytes):
    """Return (TB, Bp): batch-tile rows and padded grid extent (Bp = grid*TB >= batch)."""
    def step_bytes(tb):
        x_bytes = 2 * tb * feat * 4               # f32 x tile, double-buffered
        o_bytes = 2 * NUM_CLASSES * tb * 4        # f32 (2, tb) output tile, double-buffered
        w_bytes = 2 * 2 * (10 * feat + 220) + 2 * 4 * 32     # bf16 weights + f32 biases
        inter   = 6 * 16 * tb * 4                 # in-kernel f32 (<=16, tb) intermediates
        return x_bytes + o_bytes + w_bytes + inter + (1 << 20)   # + headroom

    # Largest lane-aligned tile the budget allows, capped at tile_b.
    cap = max(128, _round_up(tile_b, 128))
    while cap > 128 and step_bytes(cap) > vmem_budget_bytes:
        cap = max(128, _round_up(cap // 2, 128))

    b8 = _round_up(batch, 8)
    if b8 <= 256:
        # Tiny batch: one (possibly partial) block covering everything.
        return b8, b8

    # Large batch: tiles of at most `cap` rows, and always >=2 grid steps so the
    # "parallel" batch axis can span both TensorCores on v7x.
    n_tiles = max(2, -(-b8 // cap))
    tb = min(cap, _round_up(-(-b8 // n_tiles), 128))
    bp = _round_up(b8, tb)
    return tb, bp


def classifier_forward(x, params, *, tile_b=8192,
                       vmem_budget_bytes=12 * 1024 * 1024):
    """x: [B, input_size] float32. params: dict of [in, out] weights + (1, out) biases."""
    x = jnp.asarray(x, jnp.float32)
    B, F = x.shape

    # Weights in (out, in) orientation (bf16 for the MXU); biases as f32 columns.
    w1 = params["w1"].T.astype(jnp.bfloat16)                 # (10, F)
    w2 = params["w2"].T.astype(jnp.bfloat16)                 # (10, 10)
    w3 = params["w3"].T.astype(jnp.bfloat16)                 # (10, 10)
    w4 = params["w4"].T.astype(jnp.bfloat16)                 # (2, 10)
    b1 = params["b1"].reshape(-1, 1).astype(jnp.float32)     # (10, 1)
    b2 = params["b2"].reshape(-1, 1).astype(jnp.float32)
    b3 = params["b3"].reshape(-1, 1).astype(jnp.float32)
    b4 = params["b4"].reshape(-1, 1).astype(jnp.float32)     # (2, 1)

    TB, Bp = _pick_tiles(B, F, tile_b, vmem_budget_bytes)
    grid = (Bp // TB,)

    # Constant-index-map operands stay VMEM-resident (DMA'd once on step 0).
    const = lambda a: pl.BlockSpec(a.shape, lambda i: (0,) * a.ndim)

    out_t = pl.pallas_call(
        _mlp_kernel,
        out_shape=jax.ShapeDtypeStruct((NUM_CLASSES, Bp), jnp.float32),
        grid=grid,
        in_specs=[
            pl.BlockSpec((TB, F), lambda i: (i, 0)),   # x: tiled over batch (partial tail OK)
            const(w1), const(b1),
            const(w2), const(b2),
            const(w3), const(b3),
            const(w4), const(b4),
        ],
        out_specs=pl.BlockSpec((NUM_CLASSES, TB), lambda i: (0, i)),
        compiler_params=pltpu.CompilerParams(
            dimension_semantics=("parallel",),          # 2-TC sharding on v7x
        ),
    )(x, w1, b1, w2, b2, w3, b3, w4, b4)

    # Drop padded/garbage columns, return the module's (B, 2) layout.
    return out_t[:, :B].T


def init_params(key, input_size):
    """torch.nn.Linear-style init (U[-1/sqrt(fan_in), 1/sqrt(fan_in)]).
    Weights stored [in, out] (transposed vs PyTorch's [out, in]); biases (1, out)."""
    dims = [(input_size, 10), (10, 10), (10, 10), (10, NUM_CLASSES)]
    params = {}
    for idx, (fan_in, fan_out) in enumerate(dims, start=1):
        key, kw, kb = jax.random.split(key, 3)
        bound = 1.0 / jnp.sqrt(jnp.float32(fan_in))
        params[f"w{idx}"] = jax.random.uniform(
            kw, (fan_in, fan_out), jnp.float32, minval=-bound, maxval=bound)
        params[f"b{idx}"] = jax.random.uniform(
            kb, (1, fan_out), jnp.float32, minval=-bound, maxval=bound)
    return params


def _reference_forward_f32(x, p):
    h = jnp.maximum(x @ p["w1"] + p["b1"], 0.0)
    h = jnp.maximum(h @ p["w2"] + p["b2"], 0.0)
    h = jnp.maximum(h @ p["w3"] + p["b3"], 0.0)
    logits = h @ p["w4"] + p["b4"]
    return jax.nn.log_softmax(logits, axis=1)


def _reference_forward_bf16(x, p):
    bf = lambda a: a.astype(jnp.bfloat16)
    dot = lambda a, b: jnp.dot(bf(a), bf(b), preferred_element_type=jnp.float32)
    h = jnp.maximum(dot(x, p["w1"]) + p["b1"], 0.0)
    h = jnp.maximum(dot(h, p["w2"]) + p["b2"], 0.0)
    h = jnp.maximum(dot(h, p["w3"]) + p["b3"], 0.0)
    logits = dot(h, p["w4"]) + p["b4"]
    return jax.nn.log_softmax(logits, axis=1)


if __name__ == "__main__":
    key = jax.random.PRNGKey(0)
    k_params, k_x, k_x2, k_x3 = jax.random.split(key, 4)

    input_size = 32
    params = init_params(k_params, input_size)

    # Main check: 2-step pipelined grid (2 x 512-row tiles), batch axis "parallel".
    batch = 1024
    x = jax.random.normal(k_x, (batch, input_size), jnp.float32)
    out = jax.block_until_ready(classifier_forward(x, params))
    assert out.shape == (batch, NUM_CLASSES)

    ref_bf16 = _reference_forward_bf16(x, params)   # same bf16-matmul numerics
    ref_f32 = _reference_forward_f32(x, params)     # exact module semantics
    assert jnp.allclose(out, ref_bf16, atol=1e-3, rtol=1e-3), "mismatch vs bf16 reference"
    assert jnp.allclose(out, ref_f32, atol=5e-2, rtol=5e-2), "mismatch vs f32 reference"

    # Ragged batch: 2-step grid with a partial trailing block (no jnp.pad copy of x).
    x_r = jax.random.normal(k_x3, (777, input_size), jnp.float32)
    out_r = jax.block_until_ready(classifier_forward(x_r, params, tile_b=512))
    assert out_r.shape == (777, NUM_CLASSES)
    assert jnp.allclose(out_r, _reference_forward_bf16(x_r, params),
                        atol=1e-3, rtol=1e-3), "mismatch on ragged batch"

    # Tiny, non-8-aligned batch: single partial block.
    x_small = jax.random.normal(k_x2, (5, input_size), jnp.float32)
    out_small = jax.block_until_ready(classifier_forward(x_small, params))
    assert out_small.shape == (5, NUM_CLASSES)
    assert jnp.allclose(out_small, _reference_forward_bf16(x_small, params),
                        atol=1e-3, rtol=1e-3), "mismatch on small batch"

    print("KERNEL_OK")
</pallas_src>

<mosaic_0001>
module attributes {stable_mosaic.version = 11 : i64} {
  func.func @_mlp_kernel(%arg0: i32, %arg1: memref<512x32xf32, #tpu.memory_space<vmem>>, %arg2: memref<10x32xbf16, #tpu.memory_space<vmem>>, %arg3: memref<10x1xf32, #tpu.memory_space<vmem>>, %arg4: memref<10x10xbf16, #tpu.memory_space<vmem>>, %arg5: memref<10x1xf32, #tpu.memory_space<vmem>>, %arg6: memref<10x10xbf16, #tpu.memory_space<vmem>>, %arg7: memref<10x1xf32, #tpu.memory_space<vmem>>, %arg8: memref<2x10xbf16, #tpu.memory_space<vmem>>, %arg9: memref<2x1xf32, #tpu.memory_space<vmem>>, %arg10: memref<2x512xf32, #tpu.memory_space<vmem>>) attributes {dimension_semantics = [#tpu.dimension_semantics<parallel>], iteration_bounds = array<i64: 2>, scalar_prefetch = 0 : i64, scratch_operands = 0 : i64, tpu.core_type = #tpu.core_type<tc>, window_params = [{transform_indices = @transform_0, window_bounds = array<i64: 512, 32>}, {pipeline_mode = #tpu.pipeline_mode<synchronous>, transform_indices = @transform_1, window_bounds = array<i64: 10, 32>}, {pipeline_mode = #tpu.pipeline_mode<synchronous>, transform_indices = @transform_2, window_bounds = array<i64: 10, 1>}, {pipeline_mode = #tpu.pipeline_mode<synchronous>, transform_indices = @transform_3, window_bounds = array<i64: 10, 10>}, {pipeline_mode = #tpu.pipeline_mode<synchronous>, transform_indices = @transform_4, window_bounds = array<i64: 10, 1>}, {pipeline_mode = #tpu.pipeline_mode<synchronous>, transform_indices = @transform_5, window_bounds = array<i64: 10, 10>}, {pipeline_mode = #tpu.pipeline_mode<synchronous>, transform_indices = @transform_6, window_bounds = array<i64: 10, 1>}, {pipeline_mode = #tpu.pipeline_mode<synchronous>, transform_indices = @transform_7, window_bounds = array<i64: 2, 10>}, {pipeline_mode = #tpu.pipeline_mode<synchronous>, transform_indices = @transform_8, window_bounds = array<i64: 2, 1>}, {transform_indices = @transform_9, window_bounds = array<i64: 2, 512>}]} {
    %c0 = arith.constant 0 : index
    %c0_0 = arith.constant 0 : index
    %0 = vector.load %arg1[%c0, %c0_0] : memref<512x32xf32, #tpu.memory_space<vmem>>, vector<512x32xf32>
    %1 = arith.truncf %0 : vector<512x32xf32> to vector<512x32xbf16>
    %c0_1 = arith.constant 0 : index
    %c0_2 = arith.constant 0 : index
    %2 = vector.load %arg2[%c0_1, %c0_2] : memref<10x32xbf16, #tpu.memory_space<vmem>>, vector<10x32xbf16>
    %cst = arith.constant dense<0.000000e+00> : vector<10x512xf32>
    %3 = tpu.matmul %2, %1, %cst {dimension_numbers = #tpu.dot_dimension_numbers<[1], [1], [0], [0], [0, 0, 1, 0], [], []>} : vector<10x32xbf16>, vector<512x32xbf16>, vector<10x512xf32> -> vector<10x512xf32>
    %c0_3 = arith.constant 0 : index
    %c0_4 = arith.constant 0 : index
    %4 = vector.load %arg3[%c0_3, %c0_4] : memref<10x1xf32, #tpu.memory_space<vmem>>, vector<10x1xf32>
    %5 = vector.broadcast %4 : vector<10x1xf32> to vector<10x512xf32>
    %6 = arith.addf %3, %5 : vector<10x512xf32>
    %cst_5 = arith.constant 0.000000e+00 : f32
    %7 = vector.broadcast %cst_5 : f32 to vector<10x512xf32>
    %8 = arith.maximumf %6, %7 : vector<10x512xf32>
    %c0_6 = arith.constant 0 : index
    %c0_7 = arith.constant 0 : index
    %9 = vector.load %arg4[%c0_6, %c0_7] : memref<10x10xbf16, #tpu.memory_space<vmem>>, vector<10x10xbf16>
    %10 = arith.truncf %8 : vector<10x512xf32> to vector<10x512xbf16>
    %cst_8 = arith.constant dense<0.000000e+00> : vector<10x512xf32>
    %11 = tpu.matmul %9, %10, %cst_8 {dimension_numbers = #tpu.dot_dimension_numbers<[1], [0], [0], [1], [0, 0, 1, 1], [], []>} : vector<10x10xbf16>, vector<10x512xbf16>, vector<10x512xf32> -> vector<10x512xf32>
    %c0_9 = arith.constant 0 : index
    %c0_10 = arith.constant 0 : index
    %12 = vector.load %arg5[%c0_9, %c0_10] : memref<10x1xf32, #tpu.memory_space<vmem>>, vector<10x1xf32>
    %13 = vector.broadcast %12 : vector<10x1xf32> to vector<10x512xf32>
    %14 = arith.addf %11, %13 : vector<10x512xf32>
    %cst_11 = arith.constant 0.000000e+00 : f32
    %15 = vector.broadcast %cst_11 : f32 to vector<10x512xf32>
    %16 = arith.maximumf %14, %15 : vector<10x512xf32>
    %c0_12 = arith.constant 0 : index
    %c0_13 = arith.constant 0 : index
    %17 = vector.load %arg6[%c0_12, %c0_13] : memref<10x10xbf16, #tpu.memory_space<vmem>>, vector<10x10xbf16>
    %18 = arith.truncf %16 : vector<10x512xf32> to vector<10x512xbf16>
    %cst_14 = arith.constant dense<0.000000e+00> : vector<10x512xf32>
    %19 = tpu.matmul %17, %18, %cst_14 {dimension_numbers = #tpu.dot_dimension_numbers<[1], [0], [0], [1], [0, 0, 1, 1], [], []>} : vector<10x10xbf16>, vector<10x512xbf16>, vector<10x512xf32> -> vector<10x512xf32>
    %c0_15 = arith.constant 0 : index
    %c0_16 = arith.constant 0 : index
    %20 = vector.load %arg7[%c0_15, %c0_16] : memref<10x1xf32, #tpu.memory_space<vmem>>, vector<10x1xf32>
    %21 = vector.broadcast %20 : vector<10x1xf32> to vector<10x512xf32>
    %22 = arith.addf %19, %21 : vector<10x512xf32>
    %cst_17 = arith.constant 0.000000e+00 : f32
    %23 = vector.broadcast %cst_17 : f32 to vector<10x512xf32>
    %24 = arith.maximumf %22, %23 : vector<10x512xf32>
    %c0_18 = arith.constant 0 : index
    %c0_19 = arith.constant 0 : index
    %25 = vector.load %arg8[%c0_18, %c0_19] : memref<2x10xbf16, #tpu.memory_space<vmem>>, vector<2x10xbf16>
    %26 = arith.truncf %24 : vector<10x512xf32> to vector<10x512xbf16>
    %cst_20 = arith.constant dense<0.000000e+00> : vector<2x512xf32>
    %27 = tpu.matmul %25, %26, %cst_20 {dimension_numbers = #tpu.dot_dimension_numbers<[1], [0], [0], [1], [0, 0, 1, 1], [], []>} : vector<2x10xbf16>, vector<10x512xbf16>, vector<2x512xf32> -> vector<2x512xf32>
    %c0_21 = arith.constant 0 : index
    %c0_22 = arith.constant 0 : index
    %28 = vector.load %arg9[%c0_21, %c0_22] : memref<2x1xf32, #tpu.memory_space<vmem>>, vector<2x1xf32>
    %29 = vector.broadcast %28 : vector<2x1xf32> to vector<2x512xf32>
    %30 = arith.addf %27, %29 : vector<2x512xf32>
    %31 = vector.extract_strided_slice %30 {offsets = [1, 0], sizes = [1, 512], strides = [1, 1]} : vector<2x512xf32> to vector<1x512xf32>
    %32 = vector.extract_strided_slice %30 {offsets = [0, 0], sizes = [1, 512], strides = [1, 1]} : vector<2x512xf32> to vector<1x512xf32>
    %33 = arith.subf %31, %32 : vector<1x512xf32>
    %cst_23 = arith.constant 0.000000e+00 : f32
    %34 = vector.broadcast %cst_23 : f32 to vector<1x512xf32>
    %35 = arith.maximumf %33, %34 : vector<1x512xf32>
    %36 = math.absf %33 : vector<1x512xf32>
    %cst_24 = arith.constant 0.000000e+00 : f32
    %37 = vector.broadcast %cst_24 : f32 to vector<1x512xf32>
    %38 = arith.subf %37, %36 : vector<1x512xf32>
    %39 = math.exp %38 : vector<1x512xf32>
    %cst_25 = arith.constant 1.000000e+00 : f32
    %40 = vector.broadcast %cst_25 : f32 to vector<1x512xf32>
    %41 = arith.addf %40, %39 : vector<1x512xf32>
    %42 = math.log %41 : vector<1x512xf32>
    %43 = arith.addf %35, %42 : vector<1x512xf32>
    %cst_26 = arith.constant 0.000000e+00 : f32
    %44 = vector.broadcast %cst_26 : f32 to vector<1x512xf32>
    %45 = arith.subf %44, %43 : vector<1x512xf32>
    %c0_27 = arith.constant 0 : index
    %c0_28 = arith.constant 0 : index
    %46 = vector.load %arg10[%c0_27, %c0_28] : memref<2x512xf32, #tpu.memory_space<vmem>>, vector<1x512xf32>
    tpu.vector_store %arg10[%c0_27, %c0_28], %45 {strides = array<i32>} : memref<2x512xf32, #tpu.memory_space<vmem>>, vector<1x512xf32>,
    %47 = arith.subf %33, %43 : vector<1x512xf32>
    %c1 = arith.constant 1 : index
    %c0_29 = arith.constant 0 : index
    %48 = vector.load %arg10[%c1, %c0_29] : memref<2x512xf32, #tpu.memory_space<vmem>>, vector<1x512xf32>
    tpu.vector_store %arg10[%c1, %c0_29], %47 {strides = array<i32>} : memref<2x512xf32, #tpu.memory_space<vmem>>, vector<1x512xf32>,
    return
  }
  func.func @transform_0(%arg0: i32) -> (i32, i32) {
    %c0_i32 = arith.constant 0 : i32
    %c0_i32_0 = arith.constant 0 : i32
    return %arg0, %c0_i32 : i32, i32
  }
  func.func @transform_1(%arg0: i32) -> (i32, i32) {
    %c0_i32 = arith.constant 0 : i32
    %c0_i32_0 = arith.constant 0 : i32
    %c0_i32_1 = arith.constant 0 : i32
    return %c0_i32, %c0_i32_0 : i32, i32
  }
  func.func @transform_2(%arg0: i32) -> (i32, i32) {
    %c0_i32 = arith.constant 0 : i32
    %c0_i32_0 = arith.constant 0 : i32
    %c0_i32_1 = arith.constant 0 : i32
    return %c0_i32, %c0_i32_0 : i32, i32
  }
  func.func @transform_3(%arg0: i32) -> (i32, i32) {
    %c0_i32 = arith.constant 0 : i32
    %c0_i32_0 = arith.constant 0 : i32
    %c0_i32_1 = arith.constant 0 : i32
    return %c0_i32, %c0_i32_0 : i32, i32
  }
  func.func @transform_4(%arg0: i32) -> (i32, i32) {
    %c0_i32 = arith.constant 0 : i32
    %c0_i32_0 = arith.constant 0 : i32
    %c0_i32_1 = arith.constant 0 : i32
    return %c0_i32, %c0_i32_0 : i32, i32
  }
  func.func @transform_5(%arg0: i32) -> (i32, i32) {
    %c0_i32 = arith.constant 0 : i32
    %c0_i32_0 = arith.constant 0 : i32
    %c0_i32_1 = arith.constant 0 : i32
    return %c0_i32, %c0_i32_0 : i32, i32
  }
  func.func @transform_6(%arg0: i32) -> (i32, i32) {
    %c0_i32 = arith.constant 0 : i32
    %c0_i32_0 = arith.constant 0 : i32
    %c0_i32_1 = arith.constant 0 : i32
    return %c0_i32, %c0_i32_0 : i32, i32
  }
  func.func @transform_7(%arg0: i32) -> (i32, i32) {
    %c0_i32 = arith.constant 0 : i32
    %c0_i32_0 = arith.constant 0 : i32
    %c0_i32_1 = arith.constant 0 : i32
    return %c0_i32, %c0_i32_0 : i32, i32
  }
  func.func @transform_8(%arg0: i32) -> (i32, i32) {
    %c0_i32 = arith.constant 0 : i32
    %c0_i32_0 = arith.constant 0 : i32
    %c0_i32_1 = arith.constant 0 : i32
    return %c0_i32, %c0_i32_0 : i32, i32
  }
  func.func @transform_9(%arg0: i32) -> (i32, i32) {
    %c0_i32 = arith.constant 0 : i32
    %c0_i32_0 = arith.constant 0 : i32
    return %c0_i32, %arg0 : i32, i32
  }
}

</mosaic_0001>

<llo_original>
// kernel: tpu_custom_call.1
$region0: #{tpu_custom_call.1}
  #allocation0 [shape = 'u32[]', space=smem, size = 0x4, offset = 0x4, fixed_abs, tag = 'smem constant byte address 0x4 - core index']
  #allocation1 [shape = 'u32[72,128]{1,0:T(1,128)}', space=vmem, size = 0x9000, scoped, tag = 'internal scratch']
  %s0 = inlined_call_operand.vmem [shape: f32[1024,32], index: 0, kind: input, shape index: {}]
  %s1 = inlined_call_operand.vmem [shape: bf16[10,32], index: 1, kind: input, shape index: {}]
  %s2 = inlined_call_operand.vmem [shape: f32[10,1], index: 2, kind: input, shape index: {}]
  %s3 = inlined_call_operand.vmem [shape: bf16[10,10], index: 3, kind: input, shape index: {}]
  %s4 = inlined_call_operand.vmem [shape: f32[10,1], index: 4, kind: input, shape index: {}]
  %s5 = inlined_call_operand.vmem [shape: bf16[10,10], index: 5, kind: input, shape index: {}]
  %s6 = inlined_call_operand.vmem [shape: f32[10,1], index: 6, kind: input, shape index: {}]
  %s7 = inlined_call_operand.vmem [shape: bf16[2,10], index: 7, kind: input, shape index: {}]
  %s8 = inlined_call_operand.vmem [shape: f32[2,1], index: 8, kind: input, shape index: {}]
  %s9 = inlined_call_operand.hbm [shape: f32[2,1024], index: 9, kind: output, shape index: {}]
  %s10 = sld [smem:[#allocation0]]
  $region69: #{tpu_custom_call.1} parent=0
    _
  %s12 = ssub.s32 1, %s10
  %s13 = scalar_select 0, %s12, %s10
  $region1: #{tpu_custom_call.1} parent=0
    #allocation2 [shape = 'u8[8192]{0}', space=vmem, size = 0x2000, scoped, tag = 'output window, operand 0']
    #allocation3 [shape = 's32[2]{0}', space=sflag, size = 0x8, scoped, tag = 'scoped memory for tpu_custom_call.1']
    %14 = vsyncpa [#allocation3], 0
    %s15 = scalar_lea.sflag [#allocation3], 1
    %16 = vsyncpa %s15, 0
    loop: start=0, step=1, limit=4
    $region2: #{tpu_custom_call.1} parent=1 // loop_pre_header
      _
    $region3: #{tpu_custom_call.1} parent=1 // loop_header
      %s18 = sphi 0, %s22
      %p19 = scmp.ge.s32.totalorder %s18, 4
      %s28 = sphi 0, %s30
      %s31 = sphi 0, %s28
      %s32 = sphi 0, %s31
      %s48 = sphi 0, %s32
      %s52 = sphi 0, %s52
      %s54 = sphi 0, %s52
      %s55 = sphi 0, %s54
      %s69 = sphi 0, %s55
      %s73 = sphi 0, %s73
      %s75 = sphi 0, %s73
      %s76 = sphi 0, %s75
      %s90 = sphi 0, %s76
      %s94 = sphi 0, %s94
      %s96 = sphi 0, %s94
      %s97 = sphi 0, %s96
      %s111 = sphi 0, %s97
      %s115 = sphi 0, %s115
      %s117 = sphi 0, %s115
      %s118 = sphi 0, %s117
      %s132 = sphi 0, %s118
      %s136 = sphi 0, %s136
      %s138 = sphi 0, %s136
      %s139 = sphi 0, %s138
      %s153 = sphi 0, %s139
      %s157 = sphi 0, %s157
      %s159 = sphi 0, %s157
      %s160 = sphi 0, %s159
      %s174 = sphi 0, %s160
      %s178 = sphi 0, %s178
      %s180 = sphi 0, %s178
      %s181 = sphi 0, %s180
      %s195 = sphi 0, %s181
      %s199 = sphi 0, %s199
      %s201 = sphi 0, %s199
      %s202 = sphi 0, %s201
      %s216 = sphi 0, %s202
      %s222 = sphi 0, %s224
      %s225 = sphi 0, %s222
      %s226 = sphi 0, %s225
      %s242 = sphi 0, %s226
    $region4: #{tpu_custom_call.1} parent=1 // loop_header_branch
      %21 = sbr.rel (%p19) target = $region8
    $region5: #{tpu_custom_call.1} parent=1 // loop_body
      %s23 = ssub.s32 %s18, 1
      %s24 = ssub.s32 %s18, 2
      %s25 = sadd.s32 %s18, 1
      %s26 = ssub.s32 %s18, %s25
      %p27 = scmp.eq.s32.totalorder %s26, 0
      %s29 = sadd.s32 %s28, 1
      %s30 = scalar_select %p27, %s28, %s29
      %p33 = pneg %p27
      %p34 = scmp.eq.s32.totalorder %s18, 1
      %p35 = por %p33, %p34
      %p36 = scmp.ne.s32.totalorder %s28, %s31
      %p37 = scmp.eq.s32.totalorder %s18, 0
      %p38 = por %p36, %p37
      %p39 = scmp.ne.s32.totalorder %s28, %s31
      %p40 = scmp.eq.s32.totalorder %s23, 1
      %p41 = por %p39, %p40
      %p42 = scmp.ne.s32.totalorder %s31, %s32
      %p43 = scmp.eq.s32.totalorder %s23, 0
      %p44 = por %p42, %p43
      %p45 = scmp.ne.s32.totalorder %s31, %s32
      %p46 = scmp.eq.s32.totalorder %s24, 1
      %p47 = por %p45, %p46
      %p49 = scmp.ne.s32.totalorder %s32, %s48
      %p50 = scmp.eq.s32.totalorder %s24, 0
      %p51 = por %p49, %p50
      %s53 = sadd.s32 %s52, 1
      %p56 = scmp.eq.s32.totalorder %s18, 1
      %p57 = scmp.ne.s32.totalorder %s52, %s54
      %p58 = scmp.eq.s32.totalorder %s18, 0
      %p59 = por %p57, %p58
      %p60 = scmp.ne.s32.totalorder %s52, %s54
      %p61 = scmp.eq.s32.totalorder %s23, 1
      %p62 = por %p60, %p61
      %p63 = scmp.ne.s32.totalorder %s54, %s55
      %p64 = scmp.eq.s32.totalorder %s23, 0
      %p65 = por %p63, %p64
      %p66 = scmp.ne.s32.totalorder %s54, %s55
      %p67 = scmp.eq.s32.totalorder %s24, 1
      %p68 = por %p66, %p67
      %p70 = scmp.ne.s32.totalorder %s55, %s69
      %p71 = scmp.eq.s32.totalorder %s24, 0
      %p72 = por %p70, %p71
      %s74 = sadd.s32 %s73, 1
      %p77 = scmp.eq.s32.totalorder %s18, 1
      %p78 = scmp.ne.s32.totalorder %s73, %s75
      %p79 = scmp.eq.s32.totalorder %s18, 0
      %p80 = por %p78, %p79
      %p81 = scmp.ne.s32.totalorder %s73, %s75
      %p82 = scmp.eq.s32.totalorder %s23, 1
      %p83 = por %p81, %p82
      %p84 = scmp.ne.s32.totalorder %s75, %s76
      %p85 = scmp.eq.s32.totalorder %s23, 0
      %p86 = por %p84, %p85
      %p87 = scmp.ne.s32.totalorder %s75, %s76
      %p88 = scmp.eq.s32.totalorder %s24, 1
      %p89 = por %p87, %p88
      %p91 = scmp.ne.s32.totalorder %s76, %s90
      %p92 = scmp.eq.s32.totalorder %s24, 0
      %p93 = por %p91, %p92
      %s95 = sadd.s32 %s94, 1
      %p98 = scmp.eq.s32.totalorder %s18, 1
      %p99 = scmp.ne.s32.totalorder %s94, %s96
      %p100 = scmp.eq.s32.totalorder %s18, 0
      %p101 = por %p99, %p100
      %p102 = scmp.ne.s32.totalorder %s94, %s96
      %p103 = scmp.eq.s32.totalorder %s23, 1
      %p104 = por %p102, %p103
      %p105 = scmp.ne.s32.totalorder %s96, %s97
      %p106 = scmp.eq.s32.totalorder %s23, 0
      %p107 = por %p105, %p106
      %p108 = scmp.ne.s32.totalorder %s96, %s97
      %p109 = scmp.eq.s32.totalorder %s24, 1
      %p110 = por %p108, %p109
      %p112 = scmp.ne.s32.totalorder %s97, %s111
      %p113 = scmp.eq.s32.totalorder %s24, 0
      %p114 = por %p112, %p113
      %s116 = sadd.s32 %s115, 1
      %p119 = scmp.eq.s32.totalorder %s18, 1
      %p120 = scmp.ne.s32.totalorder %s115, %s117
      %p121 = scmp.eq.s32.totalorder %s18, 0
      %p122 = por %p120, %p121
      %p123 = scmp.ne.s32.totalorder %s115, %s117
      %p124 = scmp.eq.s32.totalorder %s23, 1
      %p125 = por %p123, %p124
      %p126 = scmp.ne.s32.totalorder %s117, %s118
      %p127 = scmp.eq.s32.totalorder %s23, 0
      %p128 = por %p126, %p127
      %p129 = scmp.ne.s32.totalorder %s117, %s118
      %p130 = scmp.eq.s32.totalorder %s24, 1
      %p131 = por %p129, %p130
      %p133 = scmp.ne.s32.totalorder %s118, %s132
      %p134 = scmp.eq.s32.totalorder %s24, 0
      %p135 = por %p133, %p134
      %s137 = sadd.s32 %s136, 1
      %p140 = scmp.eq.s32.totalorder %s18, 1
      %p141 = scmp.ne.s32.totalorder %s136, %s138
      %p142 = scmp.eq.s32.totalorder %s18, 0
      %p143 = por %p141, %p142
      %p144 = scmp.ne.s32.totalorder %s136, %s138
      %p145 = scmp.eq.s32.totalorder %s23, 1
      %p146 = por %p144, %p145
      %p147 = scmp.ne.s32.totalorder %s138, %s139
      %p148 = scmp.eq.s32.totalorder %s23, 0
      %p149 = por %p147, %p148
      %p150 = scmp.ne.s32.totalorder %s138, %s139
      %p151 = scmp.eq.s32.totalorder %s24, 1
      %p152 = por %p150, %p151
      %p154 = scmp.ne.s32.totalorder %s139, %s153
      %p155 = scmp.eq.s32.totalorder %s24, 0
      %p156 = por %p154, %p155
      %s158 = sadd.s32 %s157, 1
      %p161 = scmp.eq.s32.totalorder %s18, 1
      %p162 = scmp.ne.s32.totalorder %s157, %s159
      %p163 = scmp.eq.s32.totalorder %s18, 0
      %p164 = por %p162, %p163
      %p165 = scmp.ne.s32.totalorder %s157, %s159
      %p166 = scmp.eq.s32.totalorder %s23, 1
      %p167 = por %p165, %p166
      %p168 = scmp.ne.s32.totalorder %s159, %s160
      %p169 = scmp.eq.s32.totalorder %s23, 0
      %p170 = por %p168, %p169
      %p171 = scmp.ne.s32.totalorder %s159, %s160
      %p172 = scmp.eq.s32.totalorder %s24, 1
      %p173 = por %p171, %p172
      %p175 = scmp.ne.s32.totalorder %s160, %s174
      %p176 = scmp.eq.s32.totalorder %s24, 0
      %p177 = por %p175, %p176
      %s179 = sadd.s32 %s178, 1
      %p182 = scmp.eq.s32.totalorder %s18, 1
      %p183 = scmp.ne.s32.totalorder %s178, %s180
      %p184 = scmp.eq.s32.totalorder %s18, 0
      %p185 = por %p183, %p184
      %p186 = scmp.ne.s32.totalorder %s178, %s180
      %p187 = scmp.eq.s32.totalorder %s23, 1
      %p188 = por %p186, %p187
      %p189 = scmp.ne.s32.totalorder %s180, %s181
      %p190 = scmp.eq.s32.totalorder %s23, 0
      %p191 = por %p189, %p190
      %p192 = scmp.ne.s32.totalorder %s180, %s181
      %p193 = scmp.eq.s32.totalorder %s24, 1
      %p194 = por %p192, %p193
      %p196 = scmp.ne.s32.totalorder %s181, %s195
      %p197 = scmp.eq.s32.totalorder %s24, 0
      %p198 = por %p196, %p197
      %s200 = sadd.s32 %s199, 1
      %p203 = scmp.eq.s32.totalorder %s18, 1
      %p204 = scmp.ne.s32.totalorder %s199, %s201
      %p205 = scmp.eq.s32.totalorder %s18, 0
      %p206 = por %p204, %p205
      %p207 = scmp.ne.s32.totalorder %s199, %s201
      %p208 = scmp.eq.s32.totalorder %s23, 1
      %p209 = por %p207, %p208
      %p210 = scmp.ne.s32.totalorder %s201, %s202
      %p211 = scmp.eq.s32.totalorder %s23, 0
      %p212 = por %p210, %p211
      %p213 = scmp.ne.s32.totalorder %s201, %s202
      %p214 = scmp.eq.s32.totalorder %s24, 1
      %p215 = por %p213, %p214
      %p217 = scmp.ne.s32.totalorder %s202, %s216
      %p218 = scmp.eq.s32.totalorder %s24, 0
      %p219 = por %p217, %p218
      %s220 = ssub.s32 %s18, %s25
      %p221 = scmp.eq.s32.totalorder %s220, 0
      %s223 = sadd.s32 %s222, 1
      %s224 = scalar_select %p221, %s222, %s223
      %p227 = pneg %p221
      %p228 = scmp.eq.s32.totalorder %s18, 1
      %p229 = por %p227, %p228
      %p230 = scmp.ne.s32.totalorder %s222, %s225
      %p231 = scmp.eq.s32.totalorder %s18, 0
      %p232 = por %p230, %p231
      %p233 = scmp.ne.s32.totalorder %s222, %s225
      %p234 = scmp.eq.s32.totalorder %s23, 1
      %p235 = por %p233, %p234
      %p236 = scmp.ne.s32.totalorder %s225, %s226
      %p237 = scmp.eq.s32.totalorder %s23, 0
      %p238 = por %p236, %p237
      %p239 = scmp.ne.s32.totalorder %s225, %s226
      %p240 = scmp.eq.s32.totalorder %s24, 1
      %p241 = por %p239, %p240
      %p243 = scmp.ne.s32.totalorder %s226, %s242
      %p244 = scmp.eq.s32.totalorder %s24, 0
      %p245 = por %p243, %p244
      %p246 = scmp.le.s32.totalorder 1, %s18
      %p247 = scmp.lt.s32.totalorder %s18, 3
      %p248 = pnand %p246, %p247
      %p249 = pneg %p248
      // Predicated region
      $region9: #{tpu_custom_call.1} parent=5 // pred_check
        _
      $region10: #{tpu_custom_call.1} parent=5 // pred_check_branch
        %251 = sbr.rel (%p248) target = $region12
      $region11: #{tpu_custom_call.1} parent=5 // pred_region
        %s252 = ssub.s32 %s18, 1
        // Predicated region
        $region13: #{tpu_custom_call.1} parent=11 // pred_check
          %p253 = pneg %p65
        $region14: #{tpu_custom_call.1} parent=11 // pred_check_branch
          %255 = sbr.rel (%p253) target = $region16
        $region15: #{tpu_custom_call.1} parent=11 // pred_region
          _
        $region16: #{tpu_custom_call.1} parent=11 // pred_fallthru
          _
        // Predicated region
        $region17: #{tpu_custom_call.1} parent=11 // pred_check
          %p256 = pneg %p86
        $region18: #{tpu_custom_call.1} parent=11 // pred_check_branch
          %258 = sbr.rel (%p256) target = $region20
        $region19: #{tpu_custom_call.1} parent=11 // pred_region
          _
        $region20: #{tpu_custom_call.1} parent=11 // pred_fallthru
          _
        // Predicated region
        $region21: #{tpu_custom_call.1} parent=11 // pred_check
          %p259 = pneg %p107
        $region22: #{tpu_custom_call.1} parent=11 // pred_check_branch
          %261 = sbr.rel (%p259) target = $region24
        $region23: #{tpu_custom_call.1} parent=11 // pred_region
          _
        $region24: #{tpu_custom_call.1} parent=11 // pred_fallthru
          _
        // Predicated region
        $region25: #{tpu_custom_call.1} parent=11 // pred_check
          %p262 = pneg %p128
        $region26: #{tpu_custom_call.1} parent=11 // pred_check_branch
          %264 = sbr.rel (%p262) target = $region28
        $region27: #{tpu_custom_call.1} parent=11 // pred_region
          _
        $region28: #{tpu_custom_call.1} parent=11 // pred_fallthru
          _
        // Predicated region
        $region29: #{tpu_custom_call.1} parent=11 // pred_check
          %p265 = pneg %p149
        $region30: #{tpu_custom_call.1} parent=11 // pred_check_branch
          %267 = sbr.rel (%p265) target = $region32
        $region31: #{tpu_custom_call.1} parent=11 // pred_region
          _
        $region32: #{tpu_custom_call.1} parent=11 // pred_fallthru
          _
        // Predicated region
        $region33: #{tpu_custom_call.1} parent=11 // pred_check
          %p268 = pneg %p170
        $region34: #{tpu_custom_call.1} parent=11 // pred_check_branch
          %270 = sbr.rel (%p268) target = $region36
        $region35: #{tpu_custom_call.1} parent=11 // pred_region
          _
        $region36: #{tpu_custom_call.1} parent=11 // pred_fallthru
          _
        // Predicated region
        $region37: #{tpu_custom_call.1} parent=11 // pred_check
          %p271 = pneg %p191
        $region38: #{tpu_custom_call.1} parent=11 // pred_check_branch
          %273 = sbr.rel (%p271) target = $region40
        $region39: #{tpu_custom_call.1} parent=11 // pred_region
          _
        $region40: #{tpu_custom_call.1} parent=11 // pred_fallthru
          _
        // Predicated region
        $region41: #{tpu_custom_call.1} parent=11 // pred_check
          %p274 = pneg %p212
        $region42: #{tpu_custom_call.1} parent=11 // pred_check_branch
          %276 = sbr.rel (%p274) target = $region44
        $region43: #{tpu_custom_call.1} parent=11 // pred_region
          _
        $region44: #{tpu_custom_call.1} parent=11 // pred_fallthru
          _
      $region12: #{tpu_custom_call.1} parent=5 // pred_fallthru
        _
      %p277 = scmp.lt.s32.totalorder %s18, 2
      // Predicated region
      $region45: #{tpu_custom_call.1} parent=5 // pred_check
        %p278 = pneg %p277
      $region46: #{tpu_custom_call.1} parent=5 // pred_check_branch
        %280 = sbr.rel (%p278) target = $region48
      $region47: #{tpu_custom_call.1} parent=5 // pred_region
        // Predicated region
        $region49: #{tpu_custom_call.1} parent=47 // pred_check
          %p281 = pneg %p38
        $region50: #{tpu_custom_call.1} parent=47 // pred_check_branch
          %283 = sbr.rel (%p281) target = $region52
        $region51: #{tpu_custom_call.1} parent=47 // pred_region
          %s284 = smul.u32 64, %s18
          %p285 = scmp.lt.s32.totalorder %s284, 127
          %s286 = scalar_select %p285, %s284, 127
          %s287 = smul.addr %s286, 8
          %s288 = scalar_lea.vmem %s0, %s287
          %s289 = smul.u32 64, %s18
        $region52: #{tpu_custom_call.1} parent=47 // pred_fallthru
          _
      $region48: #{tpu_custom_call.1} parent=5 // pred_fallthru
        _
      %p290 = scmp.le.s32.totalorder 1, %s18
      %p291 = scmp.lt.s32.totalorder %s18, 3
      %p292 = pnand %p290, %p291
      %p293 = pneg %p292
      // Predicated region
      $region53: #{tpu_custom_call.1} parent=5 // pred_check
        _
      $region54: #{tpu_custom_call.1} parent=5 // pred_check_branch
        %295 = sbr.rel (%p292) target = $region56
      $region55: #{tpu_custom_call.1} parent=5 // pred_region
        %s296 = ssub.s32 %s18, 1
        %s297 = smul.u32 64, %s23
        %p298 = scmp.lt.s32.totalorder %s297, 127
        %s299 = scalar_select %p298, %s297, 127
        %s300 = smul.addr %s299, 8
        %s301 = scalar_lea.vmem %s0, %s300
        %p302 = pneg %p44
        %p303 = pneg %p41
        %p304 = pneg %p65
        %p305 = pneg %p62
        %p306 = pneg %p86
        %p307 = pneg %p83
        %p308 = pneg %p107
        %p309 = pneg %p104
        %p310 = pneg %p128
        %p311 = pneg %p125
        %p312 = pneg %p149
        %p313 = pneg %p146
        %p314 = pneg %p170
        %p315 = pneg %p167
        %p316 = pneg %p191
        %p317 = pneg %p188
        %p318 = pneg %p212
        %p319 = pneg %p209
        %p320 = pneg %p238
        %p321 = pneg %p235
        %s322 = sand.u32 %s225, 1
        %s323 = scalar_lea.sflag [#allocation3], %s322
        %s324 = sand.u32 %s225, 1
        %s325 = smul.addr %s324, 8
        %s326 = scalar_lea.vmem [#allocation2], %s325
        %s327 = smul.u32 64, %s23
        %p328 = scmp.lt.s32.totalorder %s327, 127
        %s329 = scalar_select %p328, %s327, 127
        %s330 = smul.addr %s329, 8
        %s331 = scalar_lea.vmem %s0, %s330
        %s332 = smul.u32 64, %s23
        %s333 = smul.u32 4, %s23
        %v335 = vld [vmem:[%s331] sm:$0xff]
        %v336 = vld [vmem:[%s331 + $0x8] sm:$0xff]
        %v337 = vld [vmem:[%s331 + $0x10] sm:$0xff]
        %v338 = vld [vmem:[%s331 + $0x18] sm:$0xff]
        %v339 = vld [vmem:[%s331 + $0x20] sm:$0xff]
        %v340 = vld [vmem:[%s331 + $0x28] sm:$0xff]
        %v341 = vld [vmem:[%s331 + $0x30] sm:$0xff]
        %v342 = vld [vmem:[%s331 + $0x38] sm:$0xff]
        %v343 = vld [vmem:[%s331 + $0x40] sm:$0xff]
        %v344 = vld [vmem:[%s331 + $0x48] sm:$0xff]
        %v345 = vld [vmem:[%s331 + $0x50] sm:$0xff]
        %v346 = vld [vmem:[%s331 + $0x58] sm:$0xff]
        %v347 = vld [vmem:[%s331 + $0x60] sm:$0xff]
        %v348 = vld [vmem:[%s331 + $0x68] sm:$0xff]
        %v349 = vld [vmem:[%s331 + $0x70] sm:$0xff]
        %v350 = vld [vmem:[%s331 + $0x78] sm:$0xff]
        %v351 = vld [vmem:[%s331 + $0x80] sm:$0xff]
        %v352 = vld [vmem:[%s331 + $0x88] sm:$0xff]
        %v353 = vld [vmem:[%s331 + $0x90] sm:$0xff]
        %v354 = vld [vmem:[%s331 + $0x98] sm:$0xff]
        %v355 = vld [vmem:[%s331 + $0xa0] sm:$0xff]
        %v356 = vld [vmem:[%s331 + $0xa8] sm:$0xff]
        %v357 = vld [vmem:[%s331 + $0xb0] sm:$0xff]
        %v358 = vld [vmem:[%s331 + $0xb8] sm:$0xff]
        %v359 = vld [vmem:[%s331 + $0xc0] sm:$0xff]
        %v360 = vld [vmem:[%s331 + $0xc8] sm:$0xff]
        %v361 = vld [vmem:[%s331 + $0xd0] sm:$0xff]
        %v362 = vld [vmem:[%s331 + $0xd8] sm:$0xff]
        %v363 = vld [vmem:[%s331 + $0xe0] sm:$0xff]
        %v364 = vld [vmem:[%s331 + $0xe8] sm:$0xff]
        %v365 = vld [vmem:[%s331 + $0xf0] sm:$0xff]
        %v366 = vld [vmem:[%s331 + $0xf8] sm:$0xff]
        %v367 = vld [vmem:[%s331 + $0x100] sm:$0xff]
        %v368 = vld [vmem:[%s331 + $0x108] sm:$0xff]
        %v369 = vld [vmem:[%s331 + $0x110] sm:$0xff]
        %v370 = vld [vmem:[%s331 + $0x118] sm:$0xff]
        %v371 = vld [vmem:[%s331 + $0x120] sm:$0xff]
        %v372 = vld [vmem:[%s331 + $0x128] sm:$0xff]
        %v373 = vld [vmem:[%s331 + $0x130] sm:$0xff]
        %v374 = vld [vmem:[%s331 + $0x138] sm:$0xff]
        %v375 = vld [vmem:[%s331 + $0x140] sm:$0xff]
        %v376 = vld [vmem:[%s331 + $0x148] sm:$0xff]
        %v377 = vld [vmem:[%s331 + $0x150] sm:$0xff]
        %v378 = vld [vmem:[%s331 + $0x158] sm:$0xff]
        %v379 = vld [vmem:[%s331 + $0x160] sm:$0xff]
        %v380 = vld [vmem:[%s331 + $0x168] sm:$0xff]
        %v381 = vld [vmem:[%s331 + $0x170] sm:$0xff]
        %v382 = vld [vmem:[%s331 + $0x178] sm:$0xff]
        %v383 = vld [vmem:[%s331 + $0x180] sm:$0xff]
        %v384 = vld [vmem:[%s331 + $0x188] sm:$0xff]
        %v385 = vld [vmem:[%s331 + $0x190] sm:$0xff]
        %v386 = vld [vmem:[%s331 + $0x198] sm:$0xff]
        %v387 = vld [vmem:[%s331 + $0x1a0] sm:$0xff]
        %v388 = vld [vmem:[%s331 + $0x1a8] sm:$0xff]
        %v389 = vld [vmem:[%s331 + $0x1b0] sm:$0xff]
        %v390 = vld [vmem:[%s331 + $0x1b8] sm:$0xff]
        %v391 = vld [vmem:[%s331 + $0x1c0] sm:$0xff]
        %v392 = vld [vmem:[%s331 + $0x1c8] sm:$0xff]
        %v393 = vld [vmem:[%s331 + $0x1d0] sm:$0xff]
        %v394 = vld [vmem:[%s331 + $0x1d8] sm:$0xff]
        %v395 = vld [vmem:[%s331 + $0x1e0] sm:$0xff]
        %v396 = vld [vmem:[%s331 + $0x1e8] sm:$0xff]
        %v397 = vld [vmem:[%s331 + $0x1f0] sm:$0xff]
        %v398 = vld [vmem:[%s331 + $0x1f8] sm:$0xff]
        %v399 = vpack.c.bf16 %v336, %v335
        %v400 = vpack.c.bf16 %v338, %v337
        %v401 = vpack.c.bf16 %v340, %v339
        %v402 = vpack.c.bf16 %v342, %v341
        %v403 = vpack.c.bf16 %v344, %v343
        %v404 = vpack.c.bf16 %v346, %v345
        %v405 = vpack.c.bf16 %v348, %v347
        %v406 = vpack.c.bf16 %v350, %v349
        %v407 = vpack.c.bf16 %v352, %v351
        %v408 = vpack.c.bf16 %v354, %v353
        %v409 = vpack.c.bf16 %v356, %v355
        %v410 = vpack.c.bf16 %v358, %v357
        %v411 = vpack.c.bf16 %v360, %v359
        %v412 = vpack.c.bf16 %v362, %v361
        %v413 = vpack.c.bf16 %v364, %v363
        %v414 = vpack.c.bf16 %v366, %v365
        %v415 = vpack.c.bf16 %v368, %v367
        %v416 = vpack.c.bf16 %v370, %v369
        %v417 = vpack.c.bf16 %v372, %v371
        %v418 = vpack.c.bf16 %v374, %v373
        %v419 = vpack.c.bf16 %v376, %v375
        %v420 = vpack.c.bf16 %v378, %v377
        %v421 = vpack.c.bf16 %v380, %v379
        %v422 = vpack.c.bf16 %v382, %v381
        %v423 = vpack.c.bf16 %v384, %v383
        %v424 = vpack.c.bf16 %v386, %v385
        %v425 = vpack.c.bf16 %v388, %v387
        %v426 = vpack.c.bf16 %v390, %v389
        %v427 = vpack.c.bf16 %v392, %v391
        %v428 = vpack.c.bf16 %v394, %v393
        %v429 = vpack.c.bf16 %v396, %v395
        %v430 = vpack.c.bf16 %v398, %v397
        %v431 = vld [vmem:[%s1] sm:$0xf]
        %v432 = vld [vmem:[%s1 + $0x4] sm:$0x1]
        %v433 = vld [vmem:[%s2] sm:$0xff]
        %v434 = vld [vmem:[%s2 + $0x8] sm:$0x3]
        %436 = vset.pattern.permute.xlu0 0
        %437 = vperm.xlu0 %436, %v433
        %v438 = vpop.permute.xlu0 %437
        %441 = vset.pattern.permute.xlu0 0
        %442 = vperm.xlu0 %441, %v434
        %v443 = vpop.permute.xlu0 %442
        %v447 = vunpack.c.l.b16 %v431
        %v448 = vunpack.c.l.b16 %v432
        %v449 = vpack.c.b16 %v448, %v447
        %vm450 = vcmask 261120
        %v452 = vsel %vm450, %v449, 0
        %v455 = vsel %vm450, %v399, 0
        %v458 = vsel %vm450, %v400, 0
        %v461 = vsel %vm450, %v401, 0
        %v464 = vsel %vm450, %v402, 0
        %v467 = vsel %vm450, %v403, 0
        %v470 = vsel %vm450, %v404, 0
        %v473 = vsel %vm450, %v405, 0
        %v476 = vsel %vm450, %v406, 0
        %v479 = vsel %vm450, %v407, 0
        %v482 = vsel %vm450, %v408, 0
        %v485 = vsel %vm450, %v409, 0
        %v488 = vsel %vm450, %v410, 0
        %v491 = vsel %vm450, %v411, 0
        %v494 = vsel %vm450, %v412, 0
        %v497 = vsel %vm450, %v413, 0
        %v500 = vsel %vm450, %v414, 0
        %v503 = vsel %vm450, %v415, 0
        %v506 = vsel %vm450, %v416, 0
        %v509 = vsel %vm450, %v417, 0
        %v512 = vsel %vm450, %v418, 0
        %v515 = vsel %vm450, %v419, 0
        %v518 = vsel %vm450, %v420, 0
        %v521 = vsel %vm450, %v421, 0
        %v524 = vsel %vm450, %v422, 0
        %v527 = vsel %vm450, %v423, 0
        %v530 = vsel %vm450, %v424, 0
        %v533 = vsel %vm450, %v425, 0
        %v536 = vsel %vm450, %v426, 0
        %v539 = vsel %vm450, %v427, 0
        %v542 = vsel %vm450, %v428, 0
        %v545 = vsel %vm450, %v429, 0
        %v548 = vsel %vm450, %v430, 0
        %550 = vmatpush.bf16.xpose.msra.mxu0 %v476
        %551 = vmatpush.bf16.xpose.msra.mxu0 %v473
        %552 = vmatpush.bf16.xpose.msra.mxu0 %v470
        %553 = vmatpush.bf16.xpose.msra.mxu0 %v467
        %554 = vmatpush.bf16.xpose.msra.mxu0 %v464
        %555 = vmatpush.bf16.xpose.msra.mxu0 %v461
        %556 = vmatpush.bf16.xpose.msra.mxu0 %v458
        %557 = vmatpush.bf16.xpose.msra.mxu0 %v455
        %558 = vmatmul.bf16.gmra.mxu0 %v452
        %v559 = vpop.f32.mrf.mxu0
        %v560 = vadd.f32 %v438, %v559
        %v561 = vpop.f32.mrf.mxu0
        %v562 = vadd.f32 %v443, %v561
        %563 = vdwg.mxu0
        %564 = vmatpush.bf16.xpose.msra.mxu0 %v500
        %565 = vmatpush.bf16.xpose.msra.mxu0 %v497
        %566 = vmatpush.bf16.xpose.msra.mxu0 %v494
        %567 = vmatpush.bf16.xpose.msra.mxu0 %v491
        %568 = vmatpush.bf16.xpose.msra.mxu0 %v488
        %569 = vmatpush.bf16.xpose.msra.mxu0 %v485
        %570 = vmatpush.bf16.xpose.msra.mxu0 %v482
        %571 = vmatpush.bf16.xpose.msra.mxu0 %v479
        %572 = vmatmul.bf16.gmra.mxu0 %v452
        %v573 = vpop.f32.mrf.mxu0
        %v574 = vadd.f32 %v438, %v573
        %v575 = vpop.f32.mrf.mxu0
        %v576 = vadd.f32 %v443, %v575
        %577 = vdwg.mxu0
        %578 = vmatpush.bf16.xpose.msra.mxu0 %v524
        %579 = vmatpush.bf16.xpose.msra.mxu0 %v521
        %580 = vmatpush.bf16.xpose.msra.mxu0 %v518
        %581 = vmatpush.bf16.xpose.msra.mxu0 %v515
        %582 = vmatpush.bf16.xpose.msra.mxu0 %v512
        %583 = vmatpush.bf16.xpose.msra.mxu0 %v509
        %584 = vmatpush.bf16.xpose.msra.mxu0 %v506
        %585 = vmatpush.bf16.xpose.msra.mxu0 %v503
        %586 = vmatmul.bf16.gmra.mxu0 %v452
        %v587 = vpop.f32.mrf.mxu0
        %v588 = vadd.f32 %v438, %v587
        %v589 = vpop.f32.mrf.mxu0
        %v590 = vadd.f32 %v443, %v589
        %591 = vdwg.mxu0
        %592 = vmatpush.bf16.xpose.msra.mxu0 %v548
        %593 = vmatpush.bf16.xpose.msra.mxu0 %v545
        %594 = vmatpush.bf16.xpose.msra.mxu0 %v542
        %595 = vmatpush.bf16.xpose.msra.mxu0 %v539
        %596 = vmatpush.bf16.xpose.msra.mxu0 %v536
        %597 = vmatpush.bf16.xpose.msra.mxu0 %v533
        %598 = vmatpush.bf16.xpose.msra.mxu0 %v530
        %599 = vmatpush.bf16.xpose.msra.mxu0 %v527
        %600 = vmatmul.bf16.gmra.mxu0 %v452
        %v601 = vpop.f32.mrf.mxu0
        %v602 = vadd.f32 %v438, %v601
        %v603 = vpop.f32.mrf.mxu0
        %v604 = vadd.f32 %v443, %v603
        %605 = vdwg.mxu0
        %v606 = vmax.f32 %v560, 0.0
        %v607 = vmax.f32 %v574, 0.0
        %v608 = vmax.f32 %v588, 0.0
        %v609 = vmax.f32 %v602, 0.0
        %v610 = vmax.f32 %v562, 0.0
        %v611 = vmax.f32 %v576, 0.0
        %v612 = vmax.f32 %v590, 0.0
        %v613 = vmax.f32 %v604, 0.0
        %v614 = vld [vmem:[%s3] sm:$0xf]
        %v615 = vld [vmem:[%s3 + $0x4] sm:$0x1]
        %v616 = vpack.c.bf16 %v610, %v606
        %v617 = vpack.c.bf16 %v611, %v607
        %v618 = vpack.c.bf16 %v612, %v608
        %v619 = vpack.c.bf16 %v613, %v609
        %v620 = vld [vmem:[%s4] sm:$0xff]
        %v621 = vld [vmem:[%s4 + $0x8] sm:$0x3]
        %623 = vset.pattern.permute.xlu0 0
        %624 = vperm.xlu0 %623, %v620
        %v625 = vpop.permute.xlu0 %624
        %628 = vset.pattern.permute.xlu0 0
        %629 = vperm.xlu0 %628, %v621
        %v630 = vpop.permute.xlu0 %629
        %v634 = vunpack.c.l.b16 %v614
        %v635 = vunpack.c.l.b16 %v615
        %v636 = vpack.c.b16 %v635, %v634
        %vm637 = vcmask 80896
        %v639 = vsel %vm637, %v636, 0
        %vm641 = vcmask 1044480
        %v643 = vsel %vm641, %v616, 0
        %v646 = vsel %vm641, %v617, 0
        %v649 = vsel %vm641, %v618, 0
        %v652 = vsel %vm641, %v619, 0
        %654 = vmatpush.bf16.msra.mxu0 0
        %655 = vmatpush.bf16.msra.mxu0 0
        %656 = vmatpush.bf16.msra.mxu0 0
        %657 = vmatpush.bf16.msra.mxu0 0
        %658 = vmatpush.bf16.msra.mxu0 0
        %659 = vmatpush.bf16.msra.mxu0 0
        %660 = vmatpush.bf16.msra.mxu0 0
        %661 = vmatpush.bf16.msra.mxu0 %v643
        %662 = vmatmul.bf16.gmra.mxu0 %v639
        %v663 = vpop.f32.mrf.mxu0
        %v664 = vadd.f32 %v625, %v663
        %v665 = vpop.f32.mrf.mxu0
        %v666 = vadd.f32 %v630, %v665
        %667 = vdwg.mxu0
        %668 = vmatpush.bf16.msra.mxu0 0
        %669 = vmatpush.bf16.msra.mxu0 0
        %670 = vmatpush.bf16.msra.mxu0 0
        %671 = vmatpush.bf16.msra.mxu0 0
        %672 = vmatpush.bf16.msra.mxu0 0
        %673 = vmatpush.bf16.msra.mxu0 0
        %674 = vmatpush.bf16.msra.mxu0 0
        %675 = vmatpush.bf16.msra.mxu0 %v646
        %676 = vmatmul.bf16.gmra.mxu0 %v639
        %v677 = vpop.f32.mrf.mxu0
        %v678 = vadd.f32 %v625, %v677
        %v679 = vpop.f32.mrf.mxu0
        %v680 = vadd.f32 %v630, %v679
        %681 = vdwg.mxu0
        %682 = vmatpush.bf16.msra.mxu0 0
        %683 = vmatpush.bf16.msra.mxu0 0
        %684 = vmatpush.bf16.msra.mxu0 0
        %685 = vmatpush.bf16.msra.mxu0 0
        %686 = vmatpush.bf16.msra.mxu0 0
        %687 = vmatpush.bf16.msra.mxu0 0
        %688 = vmatpush.bf16.msra.mxu0 0
        %689 = vmatpush.bf16.msra.mxu0 %v649
        %690 = vmatmul.bf16.gmra.mxu0 %v639
        %v691 = vpop.f32.mrf.mxu0
        %v692 = vadd.f32 %v625, %v691
        %v693 = vpop.f32.mrf.mxu0
        %v694 = vadd.f32 %v630, %v693
        %695 = vdwg.mxu0
        %696 = vmatpush.bf16.msra.mxu0 0
        %697 = vmatpush.bf16.msra.mxu0 0
        %698 = vmatpush.bf16.msra.mxu0 0
        %699 = vmatpush.bf16.msra.mxu0 0
        %700 = vmatpush.bf16.msra.mxu0 0
        %701 = vmatpush.bf16.msra.mxu0 0
        %702 = vmatpush.bf16.msra.mxu0 0
        %703 = vmatpush.bf16.msra.mxu0 %v652
        %704 = vmatmul.bf16.gmra.mxu0 %v639
        %v705 = vpop.f32.mrf.mxu0
        %v706 = vadd.f32 %v625, %v705
        %v707 = vpop.f32.mrf.mxu0
        %v708 = vadd.f32 %v630, %v707
        %709 = vdwg.mxu0
        %v710 = vmax.f32 %v664, 0.0
        %v711 = vmax.f32 %v678, 0.0
        %v712 = vmax.f32 %v692, 0.0
        %v713 = vmax.f32 %v706, 0.0
        %v714 = vmax.f32 %v666, 0.0
        %v715 = vmax.f32 %v680, 0.0
        %v716 = vmax.f32 %v694, 0.0
        %v717 = vmax.f32 %v708, 0.0
        %v718 = vld [vmem:[%s5] sm:$0xf]
        %v719 = vld [vmem:[%s5 + $0x4] sm:$0x1]
        %v720 = vpack.c.bf16 %v714, %v710
        %v721 = vpack.c.bf16 %v715, %v711
        %v722 = vpack.c.bf16 %v716, %v712
        %v723 = vpack.c.bf16 %v717, %v713
        %v724 = vld [vmem:[%s6] sm:$0xff]
        %v725 = vld [vmem:[%s6 + $0x8] sm:$0x3]
        %727 = vset.pattern.permute.xlu0 0
        %728 = vperm.xlu0 %727, %v724
        %v729 = vpop.permute.xlu0 %728
        %732 = vset.pattern.permute.xlu0 0
        %733 = vperm.xlu0 %732, %v725
        %v734 = vpop.permute.xlu0 %733
        %v738 = vunpack.c.l.b16 %v718
        %v739 = vunpack.c.l.b16 %v719
        %v740 = vpack.c.b16 %v739, %v738
        %v742 = vsel %vm637, %v740, 0
        %v745 = vsel %vm641, %v720, 0
        %v748 = vsel %vm641, %v721, 0
        %v751 = vsel %vm641, %v722, 0
        %v754 = vsel %vm641, %v723, 0
        %756 = vmatpush.bf16.msra.mxu0 0
        %757 = vmatpush.bf16.msra.mxu0 0
        %758 = vmatpush.bf16.msra.mxu0 0
        %759 = vmatpush.bf16.msra.mxu0 0
        %760 = vmatpush.bf16.msra.mxu0 0
        %761 = vmatpush.bf16.msra.mxu0 0
        %762 = vmatpush.bf16.msra.mxu0 0
        %763 = vmatpush.bf16.msra.mxu0 %v745
        %764 = vmatmul.bf16.gmra.mxu0 %v742
        %v765 = vpop.f32.mrf.mxu0
        %v766 = vadd.f32 %v729, %v765
        %v767 = vpop.f32.mrf.mxu0
        %v768 = vadd.f32 %v734, %v767
        %769 = vdwg.mxu0
        %770 = vmatpush.bf16.msra.mxu0 0
        %771 = vmatpush.bf16.msra.mxu0 0
        %772 = vmatpush.bf16.msra.mxu0 0
        %773 = vmatpush.bf16.msra.mxu0 0
        %774 = vmatpush.bf16.msra.mxu0 0
        %775 = vmatpush.bf16.msra.mxu0 0
        %776 = vmatpush.bf16.msra.mxu0 0
        %777 = vmatpush.bf16.msra.mxu0 %v748
        %778 = vmatmul.bf16.gmra.mxu0 %v742
        %v779 = vpop.f32.mrf.mxu0
        %v780 = vadd.f32 %v729, %v779
        %v781 = vpop.f32.mrf.mxu0
        %v782 = vadd.f32 %v734, %v781
        %783 = vdwg.mxu0
        %784 = vmatpush.bf16.msra.mxu0 0
        %785 = vmatpush.bf16.msra.mxu0 0
        %786 = vmatpush.bf16.msra.mxu0 0
        %787 = vmatpush.bf16.msra.mxu0 0
        %788 = vmatpush.bf16.msra.mxu0 0
        %789 = vmatpush.bf16.msra.mxu0 0
        %790 = vmatpush.bf16.msra.mxu0 0
        %791 = vmatpush.bf16.msra.mxu0 %v751
        %792 = vmatmul.bf16.gmra.mxu0 %v742
        %v793 = vpop.f32.mrf.mxu0
        %v794 = vadd.f32 %v729, %v793
        %v795 = vpop.f32.mrf.mxu0
        %v796 = vadd.f32 %v734, %v795
        %797 = vdwg.mxu0
        %798 = vmatpush.bf16.msra.mxu0 0
        %799 = vmatpush.bf16.msra.mxu0 0
        %800 = vmatpush.bf16.msra.mxu0 0
        %801 = vmatpush.bf16.msra.mxu0 0
        %802 = vmatpush.bf16.msra.mxu0 0
        %803 = vmatpush.bf16.msra.mxu0 0
        %804 = vmatpush.bf16.msra.mxu0 0
        %805 = vmatpush.bf16.msra.mxu0 %v754
        %806 = vmatmul.bf16.gmra.mxu0 %v742
        %v807 = vpop.f32.mrf.mxu0
        %v808 = vadd.f32 %v729, %v807
        %v809 = vpop.f32.mrf.mxu0
        %v810 = vadd.f32 %v734, %v809
        %811 = vdwg.mxu0
        %v812 = vmax.f32 %v766, 0.0
        %v813 = vmax.f32 %v780, 0.0
        %v814 = vmax.f32 %v794, 0.0
        %v815 = vmax.f32 %v808, 0.0
        %v816 = vmax.f32 %v768, 0.0
        %v817 = vmax.f32 %v782, 0.0
        %v818 = vmax.f32 %v796, 0.0
        %v819 = vmax.f32 %v810, 0.0
        %v820 = vld [vmem:[%s7] sm:$0x1]
        %v821 = vpack.c.bf16 %v816, %v812
        %v822 = vpack.c.bf16 %v817, %v813
        %v823 = vpack.c.bf16 %v818, %v814
        %v824 = vpack.c.bf16 %v819, %v815
        %v825 = vld [vmem:[%s8] sm:$0x3]
        %827 = vset.pattern.permute.xlu0 0
        %828 = vperm.xlu0 %827, %v825
        %v829 = vpop.permute.xlu0 %828
        %v832 = vsel %vm637, %v820, 0
        %v835 = vsel %vm641, %v821, 0
        %v838 = vsel %vm641, %v822, 0
        %v841 = vsel %vm641, %v823, 0
        %v844 = vsel %vm641, %v824, 0
        %846 = vmatpush.bf16.msra.mxu0 0
        %847 = vmatpush.bf16.msra.mxu0 0
        %848 = vmatpush.bf16.msra.mxu0 0
        %849 = vmatpush.bf16.msra.mxu0 0
        %850 = vmatpush.bf16.msra.mxu0 0
        %851 = vmatpush.bf16.msra.mxu0 0
        %852 = vmatpush.bf16.msra.mxu0 0
        %853 = vmatpush.bf16.msra.mxu0 %v835
        %854 = vmatmul.bf16.gmra.mxu0 %v832
        %v855 = vpop.f32.mrf.mxu0
        %v856 = vadd.f32 %v829, %v855
        %v857 = vpop.f32.mrf.mxu0
        %858 = vdwg.mxu0
        %859 = vmatpush.bf16.msra.mxu0 0
        %860 = vmatpush.bf16.msra.mxu0 0
        %861 = vmatpush.bf16.msra.mxu0 0
        %862 = vmatpush.bf16.msra.mxu0 0
        %863 = vmatpush.bf16.msra.mxu0 0
        %864 = vmatpush.bf16.msra.mxu0 0
        %865 = vmatpush.bf16.msra.mxu0 0
        %866 = vmatpush.bf16.msra.mxu0 %v838
        %867 = vmatmul.bf16.gmra.mxu0 %v832
        %v868 = vpop.f32.mrf.mxu0
        %v869 = vadd.f32 %v829, %v868
        %v870 = vpop.f32.mrf.mxu0
        %871 = vdwg.mxu0
        %872 = vmatpush.bf16.msra.mxu0 0
        %873 = vmatpush.bf16.msra.mxu0 0
        %874 = vmatpush.bf16.msra.mxu0 0
        %875 = vmatpush.bf16.msra.mxu0 0
        %876 = vmatpush.bf16.msra.mxu0 0
        %877 = vmatpush.bf16.msra.mxu0 0
        %878 = vmatpush.bf16.msra.mxu0 0
        %879 = vmatpush.bf16.msra.mxu0 %v841
        %880 = vmatmul.bf16.gmra.mxu0 %v832
        %v881 = vpop.f32.mrf.mxu0
        %v882 = vadd.f32 %v829, %v881
        %v883 = vpop.f32.mrf.mxu0
        %884 = vdwg.mxu0
        %885 = vmatpush.bf16.msra.mxu0 0
        %886 = vmatpush.bf16.msra.mxu0 0
        %887 = vmatpush.bf16.msra.mxu0 0
        %888 = vmatpush.bf16.msra.mxu0 0
        %889 = vmatpush.bf16.msra.mxu0 0
        %890 = vmatpush.bf16.msra.mxu0 0
        %891 = vmatpush.bf16.msra.mxu0 0
        %892 = vmatpush.bf16.msra.mxu0 %v844
        %893 = vmatmul.bf16.gmra.mxu0 %v832
        %v894 = vpop.f32.mrf.mxu0
        %v895 = vadd.f32 %v829, %v894
        %v896 = vpop.f32.mrf.mxu0
        %897 = vdwg.mxu0
        %v902 = vrot.slane %v856, 7
        %v903 = vrot.slane %v869, 7
        %v904 = vrot.slane %v882, 7
        %v905 = vrot.slane %v895, 7
        %v910 = vsub.f32 %v856, %v902
        %v911 = vsub.f32 %v869, %v903
        %v912 = vsub.f32 %v882, %v904
        %v913 = vsub.f32 %v895, %v905
        %v914 = vmax.f32 %v910, 0.0
        %v915 = vmax.f32 %v911, 0.0
        %v916 = vmax.f32 %v912, 0.0
        %v917 = vmax.f32 %v913, 0.0
        %v918 = vand.u32 2147483647, %v910
        %v919 = vand.u32 2147483647, %v911
        %v920 = vand.u32 2147483647, %v912
        %v921 = vand.u32 2147483647, %v913
        %v922 = vsub.f32 0.0, %v918
        %v923 = vsub.f32 0.0, %v919
        %v924 = vsub.f32 0.0, %v920
        %v925 = vsub.f32 0.0, %v921
        %v926 = vmul.f32 %v922, 1.442695
        %v927 = vpow.pop %v926
        %v928 = vmul.f32 %v923, 1.442695
        %v929 = vpow.pop %v928
        %v930 = vmul.f32 %v924, 1.442695
        %v931 = vpow.pop %v930
        %v932 = vmul.f32 %v925, 1.442695
        %v933 = vpow.pop %v932
        %v934 = vadd.f32 %v927, 1.0
        %v935 = vadd.f32 %v929, 1.0
        %v936 = vadd.f32 %v931, 1.0
        %v937 = vadd.f32 %v933, 1.0
        %v938 = vlog2.pop %v934
        %v939 = vmul.f32 %v938, 0.6931472
        %v940 = vlog2.pop %v935
        %v941 = vmul.f32 %v940, 0.6931472
        %v942 = vlog2.pop %v936
        %v943 = vmul.f32 %v942, 0.6931472
        %v944 = vlog2.pop %v937
        %v945 = vmul.f32 %v944, 0.6931472
        %v946 = vadd.f32 %v914, %v939
        %v947 = vadd.f32 %v915, %v941
        %v948 = vadd.f32 %v916, %v943
        %v949 = vadd.f32 %v917, %v945
        %v950 = vsub.f32 0.0, %v946
        %v951 = vsub.f32 0.0, %v947
        %v952 = vsub.f32 0.0, %v948
        %v953 = vsub.f32 0.0, %v949
        %958 = vst [vmem:[#allocation1] sm:$0xff] %v950
        %959 = vst [vmem:[#allocation1 + $0x9] sm:$0xff] %v951
        %960 = vst [vmem:[#allocation1 + $0x12] sm:$0xff] %v952
        %961 = vst [vmem:[#allocation1 + $0x1b] sm:$0xff] %v953
        %s962 = scalar_lea.vmem [#allocation1], 1
        %v963 = vld [vmem:[%s962] ss:$9 sm:$0xff]
        %v965 = vlaneseq
        %vm966 = vcmp.ge.s32.totalorder %v965, 0
        %vm967 = vcmp.lt.s32.totalorder %v965, 512
        %vm968 = vmand %vm966, %vm967
        %969 = vst.msk [vmem:[%s326] ss:$2 sm:$0xf] %vm968, %v963
        %v970 = vsub.f32 %v910, %v946
        %v971 = vsub.f32 %v911, %v947
        %v972 = vsub.f32 %v912, %v948
        %v973 = vsub.f32 %v913, %v949
        %978 = vst [vmem:[#allocation1] sm:$0xff] %v970
        %979 = vst [vmem:[#allocation1 + $0x9] sm:$0xff] %v971
        %980 = vst [vmem:[#allocation1 + $0x12] sm:$0xff] %v972
        %981 = vst [vmem:[#allocation1 + $0x1b] sm:$0xff] %v973
        %s982 = scalar_lea.vmem [#allocation1], 1
        %v983 = vld [vmem:[%s982] ss:$9 sm:$0xff]
        %s985 = scalar_lea.vmem %s326, 1 [#allocation2]
        %986 = vst.msk [vmem:[%s985] ss:$2 sm:$0xf] %vm968, %v983
        %s987 = sand.u32 %s225, 1
        %s988 = scalar_lea.sflag [#allocation3], %s987
        %s989 = sand.u32 %s225, 1
        %s990 = smul.addr %s989, 8
        %s991 = scalar_lea.vmem [#allocation2], %s990
        // Predicated region
        $region57: #{tpu_custom_call.1} parent=55 // pred_check
          %p992 = pneg %p235
        $region58: #{tpu_custom_call.1} parent=55 // pred_check_branch
          %994 = sbr.rel (%p992) target = $region60
        $region59: #{tpu_custom_call.1} parent=55 // pred_region
          %s995 = smul.u32 4, %s23
          %997 = vsyncadd %s988, 0
          %s998 = smul.addr %s995, 2
          %s999 = scalar_lea.hbm %s9, %s998
          %s1001 = sshll.u32 %s991, 4
          %s1002 = int_to_ptr.vmem [resolvable:$true] %s1001
          %s1003 = sshll.u32 %s999, 4
          %s1004 = int_to_ptr.hbm [resolvable:$true] %s1003
          %1006 = dma.vmem_to_hbm [thread:$0]  %s1002, 128, %s1004, %s988
        $region60: #{tpu_custom_call.1} parent=55 // pred_fallthru
          _
      $region56: #{tpu_custom_call.1} parent=5 // pred_fallthru
        _
      %p1007 = scmp.le.s32.totalorder 2, %s18
      // Predicated region
      $region61: #{tpu_custom_call.1} parent=5 // pred_check
        %p1008 = pneg %p1007
      $region62: #{tpu_custom_call.1} parent=5 // pred_check_branch
        %1010 = sbr.rel (%p1008) target = $region64
      $region63: #{tpu_custom_call.1} parent=5 // pred_region
        %s1011 = ssub.s32 %s18, 2
        // Predicated region
        $region65: #{tpu_custom_call.1} parent=63 // pred_check
          %p1012 = pneg %p241
        $region66: #{tpu_custom_call.1} parent=63 // pred_check_branch
          %1014 = sbr.rel (%p1012) target = $region68
        $region67: #{tpu_custom_call.1} parent=63 // pred_region
          %s1015 = sand.u32 %s226, 1
          %s1016 = scalar_lea.sflag [#allocation3], %s1015
          %s1017 = sand.u32 %s226, 1
          %s1018 = smul.addr %s1017, 8
          %s1019 = scalar_lea.vmem [#allocation2], %s1018
          %1021 = dma.done %s1016, 128
        $region68: #{tpu_custom_call.1} parent=63 // pred_fallthru
          _
      $region64: #{tpu_custom_call.1} parent=5 // pred_fallthru
        _
    $region6: #{tpu_custom_call.1} parent=1 // loop_footer
      %s22 = sadd.s32 1, %s18
    $region7: #{tpu_custom_call.1} parent=1 // loop_footer_branch
      %17 = sbr.rel target = $region3
    $region8: #{tpu_custom_call.1} parent=1 // loop_exit
      _
    %1022 = vsyncpa [#allocation3], 1
    %s1023 = scalar_lea.sflag [#allocation3], 1
    %1024 = vsyncpa %s1023, 1

</llo_original>
